<compile_context>
chip_gen: v7x
topology: tpu7x:2x2x1
jax: 0.10.0
libtpu: 0.0.40
codegen_flags: <defaults>
</compile_context>

<pallas_src>
import jax
import jax.numpy as jnp
from jax.experimental import pallas as pl
from jax.experimental.pallas import tpu as pltpu

_MIB = 1 << 20
# Per-core VMEM working-set budget used for tile selection.  44 MiB keeps the
# double-buffered tiles inside v7x's 64 MiB/TC while still allowing
# weight-resident (K, ~1024) slabs; v5e/v6e (128 MiB) have ample headroom.
_VMEM_BUDGET = 44 * _MIB


def _pick(dim, candidates):
    """Largest candidate that evenly divides `dim`, else the full dim."""
    for c in candidates:
        if dim >= c and dim % c == 0:
            return c
    return dim


def _working_set_bytes(tm, tn, tk, k_tiled, out_itemsize):
    """Estimated VMEM usage: Pallas double-buffers every BlockSpec'd operand."""
    b = 2 * tm * tk * 2            # x tile, bf16
    b += 2 * tk * tn * 2           # weight tile, bf16
    b += 2 * 1 * tn * 4            # bias tile, f32
    b += 2 * tm * tn * out_itemsize
    if k_tiled:
        b += tm * tn * 4           # f32 accumulator scratch
    return b


def _select_tiles(M, O, K, out_itemsize):
    tm = _pick(M, (512, 256, 128))
    tn = _pick(O, (1024, 512, 256, 128))
    # Shrink tn, then tm, until the full-K double-buffered working set fits.
    while (_working_set_bytes(tm, tn, K, False, out_itemsize) > _VMEM_BUDGET
           and tn >= 512 and O % (tn // 2) == 0):
        tn //= 2
    while (_working_set_bytes(tm, tn, K, False, out_itemsize) > _VMEM_BUDGET
           and tm >= 256 and M % (tm // 2) == 0):
        tm //= 2
    # v7x megacore: ensure >= 2 parallel output blocks when the dims allow it,
    # so neither TensorCore idles after the tiles were enlarged.
    if (M // tm) * (O // tn) < 2:
        if tn >= 256 and O % (tn // 2) == 0:
            tn //= 2
        elif tm >= 256 and M % (tm // 2) == 0:
            tm //= 2
    if _working_set_bytes(tm, tn, K, False, out_itemsize) <= _VMEM_BUDGET:
        return tm, tn, K, False
    # Fallback: K grid-axis tiling (only for pathologically large hidden dims).
    tk = _pick(K, (2048, 1024, 512, 256, 128))
    while (_working_set_bytes(tm, tn, tk, True, out_itemsize) > _VMEM_BUDGET
           and tk >= 512 and K % (tk // 2) == 0):
        tk //= 2
    return tm, tn, tk, True


def _linear_bias_kernel(x_ref, w_ref, b_ref, o_ref):
    # Single-shot contraction: x (tm, K) @ W (K, tn) on the MXU with f32
    # accumulation kept in the MXU result path; bias added once, then store.
    acc = jnp.dot(x_ref[...], w_ref[...], preferred_element_type=jnp.float32)
    o_ref[...] = (acc + b_ref[...]).astype(o_ref.dtype)


def _linear_bias_kernel_ktiled(x_ref, w_ref, b_ref, o_ref, acc_ref):
    # Fallback path when K is grid-tiled (K too large for a full-K tile).
    k = pl.program_id(2)

    @pl.when(k == 0)
    def _():
        # Seed the accumulator with the broadcast bias: no epilogue add needed.
        acc_ref[...] = jnp.broadcast_to(b_ref[...], acc_ref.shape)

    acc_ref[...] += jnp.dot(x_ref[...], w_ref[...],
                            preferred_element_type=jnp.float32)

    @pl.when(k == pl.num_programs(2) - 1)
    def _():
        o_ref[...] = acc_ref[...].astype(o_ref.dtype)


def self_attn_linear(x, w_kn, b, *, compute_dtype=jnp.bfloat16, out_dtype=None):
    """y = x @ W^T + b (nn.Linear semantics) via a tiled Pallas TPU kernel.

    x    : (B, S, H)  activations
    w_kn : (H, O)     weight, already transposed to MXU-native (in, out) layout
    b    : (O,)       bias
    """
    B, S, H = x.shape
    K, O = w_kn.shape
    assert K == H, "weight in_features must match x hidden dim"
    M = B * S

    out_dtype = out_dtype if out_dtype is not None else x.dtype
    out_itemsize = jnp.dtype(out_dtype).itemsize
    cdt_bytes = jnp.dtype(compute_dtype).itemsize

    tm, tn, tk, k_tiled = _select_tiles(M, O, K, out_itemsize)
    n_i, n_j = M // tm, O // tn

    x2d = x.reshape(M, H).astype(compute_dtype)
    wc = w_kn if w_kn.dtype == compute_dtype else w_kn.astype(compute_dtype)
    b2d = b.reshape(1, O).astype(jnp.float32)

    est_vmem = _working_set_bytes(tm, tn, tk, k_tiled, out_itemsize)
    vmem_limit = int(min(max(est_vmem * 13 // 10, 32 * _MIB), 58 * _MIB))

    if not k_tiled:
        # Weight-resident sweep: the output-slab axis j is outermost, so the
        # (K, tn) weight tile's block index is constant across the whole inner
        # M sweep and Pallas skips its re-DMA -> weight read from HBM once.
        cost = pl.CostEstimate(
            flops=2 * M * O * K,
            transcendentals=0,
            bytes_accessed=(n_j * M * K * cdt_bytes     # x re-read once per weight slab
                            + O * K * cdt_bytes          # weight read exactly once
                            + O * 4                      # bias
                            + M * O * out_itemsize),     # output written once
        )
        out = pl.pallas_call(
            _linear_bias_kernel,
            out_shape=jax.ShapeDtypeStruct((M, O), out_dtype),
            grid_spec=pltpu.PrefetchScalarGridSpec(
                num_scalar_prefetch=0,
                grid=(n_j, n_i),
                in_specs=[
                    pl.BlockSpec((tm, K), lambda j, i: (i, 0)),   # activations
                    pl.BlockSpec((K, tn), lambda j, i: (0, j)),   # resident W slab
                    pl.BlockSpec((1, tn), lambda j, i: (0, j)),   # bias
                ],
                out_specs=pl.BlockSpec((tm, tn), lambda j, i: (i, j)),
            ),
            compiler_params=pltpu.CompilerParams(
                dimension_semantics=("parallel", "parallel"),
                vmem_limit_bytes=vmem_limit,
            ),
            cost_estimate=cost,
        )(x2d, wc, b2d)
    else:
        n_k = K // tk
        cost = pl.CostEstimate(
            flops=2 * M * O * K,
            transcendentals=0,
            bytes_accessed=(n_j * M * K * cdt_bytes      # x re-read per N slab
                            + n_i * O * K * cdt_bytes    # W re-read per M slab
                            + O * 4
                            + M * O * out_itemsize),
        )
        out = pl.pallas_call(
            _linear_bias_kernel_ktiled,
            out_shape=jax.ShapeDtypeStruct((M, O), out_dtype),
            grid_spec=pltpu.PrefetchScalarGridSpec(
                num_scalar_prefetch=0,
                grid=(n_i, n_j, n_k),
                in_specs=[
                    pl.BlockSpec((tm, tk), lambda i, j, k: (i, k)),
                    pl.BlockSpec((tk, tn), lambda i, j, k: (k, j)),
                    pl.BlockSpec((1, tn), lambda i, j, k: (0, j)),
                ],
                out_specs=pl.BlockSpec((tm, tn), lambda i, j, k: (i, j)),
                scratch_shapes=[pltpu.VMEM((tm, tn), jnp.float32)],
            ),
            compiler_params=pltpu.CompilerParams(
                dimension_semantics=("parallel", "parallel", "arbitrary"),
                vmem_limit_bytes=vmem_limit,
            ),
            cost_estimate=cost,
        )(x2d, wc, b2d)

    return out.reshape(B, S, O)


class FakeLlama3DecoderBlockPallas:
    def __init__(self, hidden_size, layer_idx=0, key=jax.random.PRNGKey(0),
                 compute_dtype=jnp.bfloat16, out_dtype=None):
        self.sim_layer_idx = layer_idx
        self.compute_dtype = compute_dtype
        self.out_dtype = out_dtype  # None -> same dtype as the input
        k1, k2, k3, k4, k5, k6 = jax.random.split(key, 6)
        H = hidden_size
        # Deterministic synthetic parameters (PyTorch nn.Linear shapes).
        self.self_attn_w = jax.random.normal(k1, (H, H), jnp.float32) * 0.02
        self.self_attn_b = jax.random.normal(k2, (H,), jnp.float32) * 0.02
        # One-time init cost: transpose the static weight to MXU-native (K, N)
        # layout and cast to the compute dtype.  No per-call HBM traffic.
        self.self_attn_w_kn = self.self_attn_w.T.astype(compute_dtype)
        # ffn1 / ffn2 are declared in the PyTorch module but unused in forward.
        self.ffn1_w = jax.random.normal(k3, (4 * H, H), jnp.float32) * 0.02
        self.ffn1_b = jax.random.normal(k4, (4 * H,), jnp.float32) * 0.02
        self.ffn2_w = jax.random.normal(k5, (H, 4 * H), jnp.float32) * 0.02
        self.ffn2_b = jax.random.normal(k6, (H,), jnp.float32) * 0.02

    def __call__(self, x):
        # forward: h = self.self_attn(x)
        return self_attn_linear(x, self.self_attn_w_kn, self.self_attn_b,
                                compute_dtype=self.compute_dtype,
                                out_dtype=self.out_dtype)


if __name__ == "__main__":
    key = jax.random.PRNGKey(0)
    kx, kp = jax.random.split(key)

    # Toy shapes consistent with the module.  Note: H=32 is below a lane-dense
    # (multiple-of-128) last dim, so stores are masked (correct but slow); the
    # tiling logic above is what scales to real Llama hidden sizes (H >= 4096).
    batch, seq, hidden = 2, 8, 32
    x = jax.random.normal(kx, (batch, seq, hidden), jnp.float32)

    block = FakeLlama3DecoderBlockPallas(hidden_size=hidden, layer_idx=0, key=kp)
    y = block(x)
    y = jax.block_until_ready(y)

    # Reference in plain JAX with the same bf16-operand / f32-accumulate math.
    x_c = x.astype(jnp.bfloat16).astype(jnp.float32)
    w_c = block.self_attn_w.astype(jnp.bfloat16).astype(jnp.float32)
    ref = jnp.einsum("bsh,oh->bso", x_c, w_c) + block.self_attn_b

    assert y.shape == (batch, seq, hidden)
    assert jnp.allclose(y, ref, atol=1e-3, rtol=1e-3), (
        float(jnp.max(jnp.abs(y - ref))))

    print("KERNEL_OK")
</pallas_src>

<mosaic_0001>
module attributes {stable_mosaic.version = 11 : i64} {
  func.func @_linear_bias_kernel(%arg0: i32, %arg1: i32, %arg2: memref<16x32xbf16, #tpu.memory_space<vmem>>, %arg3: memref<32x32xbf16, #tpu.memory_space<vmem>>, %arg4: memref<1x32xf32, #tpu.memory_space<vmem>>, %arg5: memref<16x32xf32, #tpu.memory_space<vmem>>) attributes {dimension_semantics = [#tpu.dimension_semantics<parallel>, #tpu.dimension_semantics<parallel>], iteration_bounds = array<i64: 1, 1>, scalar_prefetch = 0 : i64, scratch_operands = 0 : i64, tpu.core_type = #tpu.core_type<tc>, window_params = [{transform_indices = @transform_0, window_bounds = array<i64: 16, 32>}, {transform_indices = @transform_1, window_bounds = array<i64: 32, 32>}, {transform_indices = @transform_2, window_bounds = array<i64: 1, 32>}, {transform_indices = @transform_3, window_bounds = array<i64: 16, 32>}]} {
    %c0 = arith.constant 0 : index
    %c0_0 = arith.constant 0 : index
    %0 = vector.load %arg2[%c0, %c0_0] : memref<16x32xbf16, #tpu.memory_space<vmem>>, vector<16x32xbf16>
    %c0_1 = arith.constant 0 : index
    %c0_2 = arith.constant 0 : index
    %1 = vector.load %arg3[%c0_1, %c0_2] : memref<32x32xbf16, #tpu.memory_space<vmem>>, vector<32x32xbf16>
    %cst = arith.constant dense<0.000000e+00> : vector<16x32xf32>
    %2 = tpu.matmul %0, %1, %cst {dimension_numbers = #tpu.dot_dimension_numbers<[1], [0], [0], [1], [0, 0, 1, 1], [], []>} : vector<16x32xbf16>, vector<32x32xbf16>, vector<16x32xf32> -> vector<16x32xf32>
    %c0_3 = arith.constant 0 : index
    %c0_4 = arith.constant 0 : index
    %3 = vector.load %arg4[%c0_3, %c0_4] : memref<1x32xf32, #tpu.memory_space<vmem>>, vector<1x32xf32>
    %4 = vector.broadcast %3 : vector<1x32xf32> to vector<16x32xf32>
    %5 = arith.addf %2, %4 : vector<16x32xf32>
    %c0_5 = arith.constant 0 : index
    %c0_6 = arith.constant 0 : index
    %6 = vector.load %arg5[%c0_5, %c0_6] : memref<16x32xf32, #tpu.memory_space<vmem>>, vector<16x32xf32>
    tpu.vector_store %arg5[%c0_5, %c0_6], %5 {strides = array<i32>} : memref<16x32xf32, #tpu.memory_space<vmem>>, vector<16x32xf32>,
    return
  }
  func.func @transform_0(%arg0: i32, %arg1: i32) -> (i32, i32) {
    %c0_i32 = arith.constant 0 : i32
    %c0_i32_0 = arith.constant 0 : i32
    return %arg1, %c0_i32 : i32, i32
  }
  func.func @transform_1(%arg0: i32, %arg1: i32) -> (i32, i32) {
    %c0_i32 = arith.constant 0 : i32
    %c0_i32_0 = arith.constant 0 : i32
    return %c0_i32, %arg0 : i32, i32
  }
  func.func @transform_2(%arg0: i32, %arg1: i32) -> (i32, i32) {
    %c0_i32 = arith.constant 0 : i32
    %c0_i32_0 = arith.constant 0 : i32
    return %c0_i32, %arg0 : i32, i32
  }
  func.func @transform_3(%arg0: i32, %arg1: i32) -> (i32, i32) {
    %c0_i32 = arith.constant 0 : i32
    return %arg1, %arg0 : i32, i32
  }
}

</mosaic_0001>

<llo_original>
// kernel: tpu_custom_call.1
$region0: #{tpu_custom_call.1}
  #allocation0 [shape = 'u32[]', space=smem, size = 0x4, offset = 0x4, fixed_abs, tag = 'smem constant byte address 0x4 - core index']
  #allocation1 [shape = 'u32[144,128]{1,0:T(1,128)}', space=vmem, size = 0x12000, scoped, tag = 'internal scratch']
  %s0 = inlined_call_operand.hbm [shape: bf16[16,32], index: 0, kind: input, shape index: {}]
  %s1 = inlined_call_operand.hbm [shape: bf16[32,32], index: 1, kind: input, shape index: {}]
  %s2 = inlined_call_operand.vmem [shape: f32[1,32], index: 2, kind: input, shape index: {}]
  %s3 = inlined_call_operand.hbm [shape: f32[16,32], index: 3, kind: output, shape index: {}]
  %s4 = sld [smem:[#allocation0]]
  $region30: #{tpu_custom_call.1} parent=0
    _
  %s6 = ssub.s32 1, %s4
  %s7 = scalar_select 0, %s6, %s4
  $region1: #{tpu_custom_call.1} parent=0
    #allocation2 [shape = 'u8[4096]{0}', space=vmem, size = 0x1000, scoped, tag = 'input window, operand 0, single buffered']
    #allocation3 [shape = 's32[1]{0}', space=sflag, size = 0x4, scoped, tag = 'scoped memory for tpu_custom_call.1']
    #allocation4 [shape = 's32[1]{0}', space=sflag, size = 0x4, scoped, tag = 'scoped memory for tpu_custom_call.1']
    #allocation5 [shape = 'u8[8192]{0}', space=vmem, size = 0x2000, scoped, tag = 'input window, operand 1, single buffered']
    #allocation6 [shape = 's32[1]{0}', space=sflag, size = 0x4, scoped, tag = 'scoped memory for tpu_custom_call.1']
    #allocation7 [shape = 'u8[8192]{0}', space=vmem, size = 0x2000, scoped, tag = 'output window, operand 0, single buffered']
    %8 = vsyncpa [#allocation3], 0
    %9 = vsyncpa [#allocation6], 0
    %10 = vsyncpa [#allocation4], 0
    // Predicated region
    $region2: #{tpu_custom_call.1} parent=1 // pred_check
      _
    $region3: #{tpu_custom_call.1} parent=1 // pred_check_branch
      %12 = sbr.rel (0) target = $region5
    $region4: #{tpu_custom_call.1} parent=1 // pred_region
      %s14 = ssub.s32 128, 128
      %15 = vsyncadd [#allocation3], %s14
      %s16 = sshll.u32 [#allocation2], 4
      %s17 = int_to_ptr.vmem [resolvable:$true] %s16
      %22 = dma.hbm_to_vmem [thread:$0]  %s0, 128, %s17, [#allocation3], 64, 64, 4
    $region5: #{tpu_custom_call.1} parent=1 // pred_fallthru
      _
    // Predicated region
    $region6: #{tpu_custom_call.1} parent=1 // pred_check
      _
    $region7: #{tpu_custom_call.1} parent=1 // pred_check_branch
      %24 = sbr.rel (0) target = $region9
    $region8: #{tpu_custom_call.1} parent=1 // pred_region
      %s26 = ssub.s32 256, 256
      %27 = vsyncadd [#allocation6], %s26
      %s28 = sshll.u32 [#allocation5], 4
      %s29 = int_to_ptr.vmem [resolvable:$true] %s28
      %34 = dma.hbm_to_vmem [thread:$0]  %s1, 256, %s29, [#allocation6], 64, 64, 4
    $region9: #{tpu_custom_call.1} parent=1 // pred_fallthru
      _
    // Predicated region
    $region10: #{tpu_custom_call.1} parent=1 // pred_check
      _
    $region11: #{tpu_custom_call.1} parent=1 // pred_check_branch
      %36 = sbr.rel (0) target = $region13
    $region12: #{tpu_custom_call.1} parent=1 // pred_region
      _
    $region13: #{tpu_custom_call.1} parent=1 // pred_fallthru
      _
    // Predicated region
    $region14: #{tpu_custom_call.1} parent=1 // pred_check
      _
    $region15: #{tpu_custom_call.1} parent=1 // pred_check_branch
      %38 = sbr.rel (0) target = $region17
    $region16: #{tpu_custom_call.1} parent=1 // pred_region
      %39 = dma.done [#allocation3], 128
    $region17: #{tpu_custom_call.1} parent=1 // pred_fallthru
      _
    // Predicated region
    $region18: #{tpu_custom_call.1} parent=1 // pred_check
      _
    $region19: #{tpu_custom_call.1} parent=1 // pred_check_branch
      %41 = sbr.rel (0) target = $region21
    $region20: #{tpu_custom_call.1} parent=1 // pred_region
      %42 = dma.done [#allocation6], 256
    $region21: #{tpu_custom_call.1} parent=1 // pred_fallthru
      _
    %v44 = vld [vmem:[#allocation2] sm:$0xf]
    %v45 = vld [vmem:[#allocation2 + $0x4] sm:$0xf]
    %v46 = vld [vmem:[#allocation5] sm:$0xf]
    %v47 = vld [vmem:[#allocation5 + $0x4] sm:$0xf]
    %v48 = vld [vmem:[#allocation5 + $0x8] sm:$0xf]
    %v49 = vld [vmem:[#allocation5 + $0xc] sm:$0xf]
    %v50 = vld [vmem:[%s2] sm:$0x1]
    %v52 = vlaneseq
    %v53 = vshrl.u32 %v52, 7
    %v54 = vsub.s32 0, %v53
    %v55 = vrot.slane %v50, %v54
    %v59 = vunpack.c.l.b16 %v44
    %v60 = vunpack.c.l.b16 %v45
    %v61 = vpack.c.b16 %v60, %v59
    %v66 = vunpack.c.l.b16 %v46
    %v67 = vunpack.c.l.b16 %v47
    %v68 = vunpack.c.l.b16 %v48
    %v69 = vunpack.c.l.b16 %v49
    %v70 = vpack.c.b16 %v67, %v66
    %v71 = vpack.c.b16 %v69, %v68
    %vm74 = vcmask 261120
    %v76 = vsel %vm74, %v61, 0
    %78 = vmatprep.subr.bf16.mxu0 0
    %79 = vmatpush1.bf16.msra.mxu0 %v70
    %80 = vmatprep.subr.bf16.mxu0 0
    %81 = vmatpush1.bf16.msra.mxu0 %v71
    %82 = vmatprep.subr.bf16.mxu0 0
    %83 = vmatpush1.bf16.msra.mxu0 0
    %84 = vmatprep.subr.bf16.mxu0 0
    %85 = vmatpush1.bf16.msra.mxu0 0
    %86 = vmatprep.subr.bf16.mxu0 0
    %87 = vmatpush1.bf16.msra.mxu0 0
    %88 = vmatprep.subr.bf16.mxu0 0
    %89 = vmatpush1.bf16.msra.mxu0 0
    %90 = vmatprep.subr.bf16.mxu0 0
    %91 = vmatpush1.bf16.msra.mxu0 0
    %92 = vmatprep.subr.bf16.mxu0 0
    %93 = vmatpush1.bf16.msra.mxu0 0
    %94 = vmatprep.subr.bf16.mxu0 0
    %95 = vmatpush1.bf16.msra.mxu0 0
    %96 = vmatprep.subr.bf16.mxu0 0
    %97 = vmatpush1.bf16.msra.mxu0 0
    %98 = vmatprep.subr.bf16.mxu0 0
    %99 = vmatpush1.bf16.msra.mxu0 0
    %100 = vmatprep.subr.bf16.mxu0 0
    %101 = vmatpush1.bf16.msra.mxu0 0
    %102 = vmatprep.subr.bf16.mxu0 0
    %103 = vmatpush1.bf16.msra.mxu0 0
    %104 = vmatprep.subr.bf16.mxu0 0
    %105 = vmatpush1.bf16.msra.mxu0 0
    %106 = vmatprep.subr.bf16.mxu0 0
    %107 = vmatpush1.bf16.msra.mxu0 0
    %108 = vmatprep.subr.bf16.mxu0 0
    %109 = vmatpush1.bf16.msra.mxu0 0
    %110 = vmatprep.mubr.bf16.mxu0 0
    %111 = vmatmul.mubr.bf16.gmra.mrb[0].mxu0 %v76
    %v112 = vpop.f32.mrb[0].mxu0
    %v113 = vadd.f32 %v55, %v112
    %v114 = vpop.f32.mrb[0].mxu0
    %v115 = vpop.f32.mrb[0].mxu0
    %v116 = vadd.f32 %v55, %v115
    %v117 = vpop.f32.mrb[0].mxu0
    %118 = vdwg.mxu0
    %119 = vst.msk [vmem:[#allocation7] sm:$0xff] %vm74, %v113
    %120 = vst.msk [vmem:[#allocation7 + $0x8] sm:$0xff] %vm74, %v116
    // Predicated region
    $region22: #{tpu_custom_call.1} parent=1 // pred_check
      _
    $region23: #{tpu_custom_call.1} parent=1 // pred_check_branch
      %122 = sbr.rel (0) target = $region25
    $region24: #{tpu_custom_call.1} parent=1 // pred_region
      %s124 = ssub.s32 256, 256
      %125 = vsyncadd [#allocation4], %s124
      %s126 = sshll.u32 [#allocation7], 4
      %s127 = int_to_ptr.vmem [resolvable:$true] %s126
      %132 = dma.vmem_to_hbm [thread:$0]  %s127, 256, %s3, [#allocation4], 128, 128, 8
    $region25: #{tpu_custom_call.1} parent=1 // pred_fallthru
      _
    // Predicated region
    $region26: #{tpu_custom_call.1} parent=1 // pred_check
      _
    $region27: #{tpu_custom_call.1} parent=1 // pred_check_branch
      %134 = sbr.rel (0) target = $region29
    $region28: #{tpu_custom_call.1} parent=1 // pred_region
      %135 = dma.done [#allocation4], 256
    $region29: #{tpu_custom_call.1} parent=1 // pred_fallthru
      _
    %136 = vsyncpa [#allocation3], 1
    %137 = vsyncpa [#allocation6], 1
    %138 = vsyncpa [#allocation4], 1

</llo_original>
